<compile_context>
chip_gen: v5e
topology: v5e:2x2
jax: 0.10.0
libtpu: 0.0.40
codegen_flags: <defaults>
</compile_context>

<pallas_src>
import functools
import math

import jax
import jax.numpy as jnp
from jax import lax
from jax.experimental import pallas as pl
from jax.experimental.pallas import tpu as pltpu


def _round_up(x, m):
    return ((x + m - 1) // m) * m


def _arcmargin_kernel(data_ref, weight_ref, label_ref, out_ref, wn_ref, *,
                      s, cos_m, sin_m, th, mm, easy_margin, block_c):
    # data_ref:   (TB, Dp)  input-feature tile for batch tile i (inner axis)
    # weight_ref: (TC, Dp)  class-weight tile for class tile j (outer axis)
    # label_ref:  (TB, 1)   int32 labels for batch tile i
    # out_ref:    (TB, TC)  logits tile (i, j)
    # wn_ref:     (TC, Dp)  bf16 scratch: normalized weights, cached across i
    j = pl.program_id(0)      # class tile (outer, "parallel")
    i = pl.program_id(1)      # batch tile (inner, "arbitrary")

    # Normalize + cast the weight tile only when it changes (first batch tile).
    @pl.when(i == 0)
    def _():
        w = weight_ref[...].astype(jnp.float32)
        # F.normalize(v) == v / max(||v||, 1e-12) == v * rsqrt(max(||v||^2, 1e-24))
        w_inv = lax.rsqrt(jnp.maximum(jnp.sum(w * w, axis=-1, keepdims=True),
                                      1e-24))
        wn_ref[...] = (w * w_inv).astype(jnp.bfloat16)

    x = data_ref[...].astype(jnp.float32)
    x_inv = lax.rsqrt(jnp.maximum(jnp.sum(x * x, axis=-1, keepdims=True), 1e-24))
    xn = (x * x_inv).astype(jnp.bfloat16)          # bf16 MXU inputs,
    label = label_ref[...]                         # (TB, 1) int32

    # cosine = xn @ wn.T without materializing the transpose: contract D on
    # both sides; f32 accumulation on the MXU.
    cosine = lax.dot_general(xn, wn_ref[...], (((1,), (1,)), ((), ())),
                             preferred_element_type=jnp.float32)  # (TB, TC)

    sine = jnp.sqrt(jnp.clip(1.0 - cosine * cosine, 0.0, 1.0))
    phi = cosine * cos_m - sine * sin_m
    if easy_margin:
        phi = jnp.where(cosine > 0.0, phi, cosine)
    else:
        phi = jnp.where(cosine > th, phi, cosine - mm)

    # one_hot(label) via iota compare, offset by this class tile's base column.
    tb, tc = out_ref.shape
    class_ids = j * block_c + lax.broadcasted_iota(jnp.int32, (tb, tc), 1)
    is_target = class_ids == label                 # (TB, TC) bool

    out_ref[...] = (jnp.where(is_target, phi, cosine) * s).astype(out_ref.dtype)


def arc_margin_product(data, weight, label, *, s=30.0, m=0.5, easy_margin=False,
                       block_b=256, block_c=2048, out_dtype=jnp.float32):
    """ArcMarginProduct.forward(data, label) with `weight` as the class matrix."""
    B, D = data.shape
    C, D2 = weight.shape
    assert D == D2, "feature dims of data and weight must match"

    cos_m = math.cos(m)
    sin_m = math.sin(m)
    th = math.cos(math.pi - m)
    mm = math.sin(math.pi - m) * m

    # Lane/sublane friendly padded shapes and tile sizes.
    d_p = _round_up(D, 128)
    tb = min(block_b, _round_up(B, 8))        # batch tile (multiple of 8)
    tc = min(block_c, _round_up(C, 128))      # class tile (multiple of 128)
    b_p = _round_up(B, tb)
    c_p = _round_up(C, tc)

    if (b_p, d_p) != (B, D):
        data = jnp.pad(data, ((0, b_p - B), (0, d_p - D)))
    if (c_p, d_p) != (C, D):
        weight = jnp.pad(weight, ((0, c_p - C), (0, d_p - D)))
    label2d = label.reshape(B, 1).astype(jnp.int32)
    if b_p != B:
        label2d = jnp.pad(label2d, ((0, b_p - B), (0, 0)), constant_values=-1)

    # Grid: class tiles OUTER (parallel / megacore-sharded), batch tiles INNER
    # (arbitrary: the normalized-weight scratch is reused across this axis and
    # the weight tile is DMA'd only when the outer index changes).
    grid = (c_p // tc, b_p // tb)

    # Scoped-VMEM budget: double-buffered data/weight/label/output tiles plus
    # the bf16 normalized-weight scratch, with headroom; capped for v7x.
    ib = jnp.dtype(data.dtype).itemsize
    wb = jnp.dtype(weight.dtype).itemsize
    ob = jnp.dtype(out_dtype).itemsize
    tiles_bytes = (2 * (tb * d_p * ib + tc * d_p * wb + tb * 128 * 4
                        + tb * tc * ob)
                   + tc * d_p * 2)
    vmem_limit = int(min(max(tiles_bytes + (8 << 20), 32 << 20), 48 << 20))

    kernel = functools.partial(
        _arcmargin_kernel, s=s, cos_m=cos_m, sin_m=sin_m, th=th, mm=mm,
        easy_margin=easy_margin, block_c=tc)

    out = pl.pallas_call(
        kernel,
        out_shape=jax.ShapeDtypeStruct((b_p, c_p), out_dtype),
        grid=grid,
        in_specs=[
            pl.BlockSpec((tb, d_p), lambda j, i: (i, 0)),   # data: batch tile
            pl.BlockSpec((tc, d_p), lambda j, i: (j, 0)),   # weight: class tile
            pl.BlockSpec((tb, 1), lambda j, i: (i, 0)),     # labels: batch tile
        ],
        out_specs=pl.BlockSpec((tb, tc), lambda j, i: (i, j)),
        scratch_shapes=[pltpu.VMEM((tc, d_p), jnp.bfloat16)],
        compiler_params=pltpu.CompilerParams(
            dimension_semantics=("parallel", "arbitrary"),
            vmem_limit_bytes=vmem_limit),
    )(data, weight, label2d)

    if (b_p, c_p) != (B, C):
        out = out[:B, :C]
    return out


if __name__ == "__main__":
    # Small synthetic shapes consistent with the module.
    B, in_features, out_features = 8, 32, 16
    key = jax.random.PRNGKey(0)
    k_data, k_w, k_lbl = jax.random.split(key, 3)

    data = jax.random.normal(k_data, (B, in_features), dtype=jnp.float32)
    # xavier_uniform_ init for weight (out_features, in_features)
    bound = math.sqrt(6.0 / (in_features + out_features))
    weight = jax.random.uniform(k_w, (out_features, in_features),
                                minval=-bound, maxval=bound, dtype=jnp.float32)
    label = jax.random.randint(k_lbl, (B,), 0, out_features, dtype=jnp.int32)

    out = arc_margin_product(data, weight, label, s=30.0, m=0.5,
                             easy_margin=False)
    jax.block_until_ready(out)

    # --- Pure-JAX references -------------------------------------------------
    def margin_logits(cosine):
        sine = jnp.sqrt(jnp.clip(1.0 - cosine ** 2, 0.0, 1.0))
        phi = cosine * math.cos(0.5) - sine * math.sin(0.5)
        phi = jnp.where(cosine > math.cos(math.pi - 0.5), phi,
                        cosine - math.sin(math.pi - 0.5) * 0.5)
        one_hot = jax.nn.one_hot(label, out_features, dtype=jnp.float32)
        return (one_hot * phi + (1.0 - one_hot) * cosine) * 30.0

    xn = data / jnp.maximum(jnp.linalg.norm(data, axis=1, keepdims=True), 1e-12)
    wn = weight / jnp.maximum(jnp.linalg.norm(weight, axis=1, keepdims=True),
                              1e-12)

    # Reference matching the kernel's bf16-MXU / f32-accumulate numerics.
    cos_bf16 = jnp.dot(xn.astype(jnp.bfloat16), wn.astype(jnp.bfloat16).T,
                       preferred_element_type=jnp.float32)
    ref_bf16 = margin_logits(cos_bf16)
    assert jnp.allclose(out, ref_bf16, atol=3e-2, rtol=1e-3), \
        "mismatch vs bf16-matched reference"

    # Full-f32 PyTorch-spec reference (loose: accounts for bf16 MXU inputs).
    ref_f32 = margin_logits(xn @ wn.T)
    assert jnp.allclose(out, ref_f32, atol=1.5e-1, rtol=1e-3), \
        "mismatch vs f32 spec reference"

    print("KERNEL_OK")
</pallas_src>

<mosaic_0001>
module attributes {stable_mosaic.version = 11 : i64} {
  func.func @_arcmargin_kernel(%arg0: i32, %arg1: i32, %arg2: memref<8x128xf32, #tpu.memory_space<vmem>>, %arg3: memref<128x128xf32, #tpu.memory_space<vmem>>, %arg4: memref<8x1xi32, #tpu.memory_space<vmem>>, %arg5: memref<8x128xf32, #tpu.memory_space<vmem>>, %arg6: memref<128x128xbf16, #tpu.memory_space<vmem>>) attributes {dimension_semantics = [#tpu.dimension_semantics<parallel>, #tpu.dimension_semantics<arbitrary>], iteration_bounds = array<i64: 1, 1>, scalar_prefetch = 0 : i64, scratch_operands = 1 : i64, tpu.core_type = #tpu.core_type<tc>, window_params = [{transform_indices = @transform_0, window_bounds = array<i64: 8, 128>}, {transform_indices = @transform_1, window_bounds = array<i64: 128, 128>}, {transform_indices = @transform_2, window_bounds = array<i64: 8, 1>}, {transform_indices = @transform_3, window_bounds = array<i64: 8, 128>}]} {
    %c0_i32 = arith.constant 0 : i32
    %0 = arith.cmpi eq, %arg1, %c0_i32 : i32
    %1 = arith.extui %0 : i1 to i32
    %c0_i32_0 = arith.constant 0 : i32
    %2 = arith.cmpi ne, %1, %c0_i32_0 : i32
    scf.if %2 {
      %c0_18 = arith.constant 0 : index
      %c0_19 = arith.constant 0 : index
      %44 = vector.load %arg3[%c0_18, %c0_19] : memref<128x128xf32, #tpu.memory_space<vmem>>, vector<128x128xf32>
      %45 = arith.mulf %44, %44 : vector<128x128xf32>
      %cst_20 = arith.constant dense<0.000000e+00> : vector<128xf32>
      %46 = vector.multi_reduction <add>, %45, %cst_20 [1] : vector<128x128xf32> to vector<128xf32>
      %47 = vector.shape_cast %46 : vector<128xf32> to vector<128x1xf32>
      %cst_21 = arith.constant 1.000000e-24 : f32
      %48 = vector.broadcast %cst_21 : f32 to vector<128x1xf32>
      %49 = arith.maximumf %47, %48 : vector<128x1xf32>
      %50 = math.rsqrt %49 : vector<128x1xf32>
      %51 = vector.broadcast %50 : vector<128x1xf32> to vector<128x128xf32>
      %52 = arith.mulf %44, %51 : vector<128x128xf32>
      %53 = arith.truncf %52 : vector<128x128xf32> to vector<128x128xbf16>
      %c0_22 = arith.constant 0 : index
      %c0_23 = arith.constant 0 : index
      %54 = vector.load %arg6[%c0_22, %c0_23] : memref<128x128xbf16, #tpu.memory_space<vmem>>, vector<128x128xbf16>
      tpu.vector_store %arg6[%c0_22, %c0_23], %53 {strides = array<i32>} : memref<128x128xbf16, #tpu.memory_space<vmem>>, vector<128x128xbf16>,
    } else {
    }
    %c0 = arith.constant 0 : index
    %c0_1 = arith.constant 0 : index
    %3 = vector.load %arg2[%c0, %c0_1] : memref<8x128xf32, #tpu.memory_space<vmem>>, vector<8x128xf32>
    %4 = arith.mulf %3, %3 : vector<8x128xf32>
    %cst = arith.constant dense<0.000000e+00> : vector<8xf32>
    %5 = vector.multi_reduction <add>, %4, %cst [1] : vector<8x128xf32> to vector<8xf32>
    %6 = vector.shape_cast %5 : vector<8xf32> to vector<8x1xf32>
    %cst_2 = arith.constant 1.000000e-24 : f32
    %7 = vector.broadcast %cst_2 : f32 to vector<8x1xf32>
    %8 = arith.maximumf %6, %7 : vector<8x1xf32>
    %9 = math.rsqrt %8 : vector<8x1xf32>
    %10 = vector.broadcast %9 : vector<8x1xf32> to vector<8x128xf32>
    %11 = arith.mulf %3, %10 : vector<8x128xf32>
    %12 = arith.truncf %11 : vector<8x128xf32> to vector<8x128xbf16>
    %c0_3 = arith.constant 0 : index
    %c0_4 = arith.constant 0 : index
    %13 = vector.load %arg4[%c0_3, %c0_4] : memref<8x1xi32, #tpu.memory_space<vmem>>, vector<8x1xi32>
    %c0_5 = arith.constant 0 : index
    %c0_6 = arith.constant 0 : index
    %14 = vector.load %arg6[%c0_5, %c0_6] : memref<128x128xbf16, #tpu.memory_space<vmem>>, vector<128x128xbf16>
    %cst_7 = arith.constant dense<0.000000e+00> : vector<8x128xf32>
    %15 = tpu.matmul %12, %14, %cst_7 {dimension_numbers = #tpu.dot_dimension_numbers<[1], [1], [0], [0], [0, 0, 1, 0], [], []>} : vector<8x128xbf16>, vector<128x128xbf16>, vector<8x128xf32> -> vector<8x128xf32>
    %16 = arith.mulf %15, %15 : vector<8x128xf32>
    %cst_8 = arith.constant 1.000000e+00 : f32
    %17 = vector.broadcast %cst_8 : f32 to vector<8x128xf32>
    %18 = arith.subf %17, %16 : vector<8x128xf32>
    %cst_9 = arith.constant 0.000000e+00 : f32
    %cst_10 = arith.constant 1.000000e+00 : f32
    %19 = vector.broadcast %cst_9 : f32 to vector<8x128xf32>
    %20 = arith.maximumf %19, %18 : vector<8x128xf32>
    %21 = vector.broadcast %cst_10 : f32 to vector<8x128xf32>
    %22 = arith.minimumf %21, %20 : vector<8x128xf32>
    %23 = math.sqrt %22 : vector<8x128xf32>
    %cst_11 = arith.constant 0.87758255 : f32
    %24 = vector.broadcast %cst_11 : f32 to vector<8x128xf32>
    %25 = arith.mulf %15, %24 : vector<8x128xf32>
    %cst_12 = arith.constant 0.47942555 : f32
    %26 = vector.broadcast %cst_12 : f32 to vector<8x128xf32>
    %27 = arith.mulf %23, %26 : vector<8x128xf32>
    %28 = arith.subf %25, %27 : vector<8x128xf32>
    %cst_13 = arith.constant -0.87758255 : f32
    %29 = vector.broadcast %cst_13 : f32 to vector<8x128xf32>
    %30 = arith.cmpf ogt, %15, %29 : vector<8x128xf32>
    %cst_14 = arith.constant 0.239712775 : f32
    %31 = vector.broadcast %cst_14 : f32 to vector<8x128xf32>
    %32 = arith.subf %15, %31 : vector<8x128xf32>
    %33 = arith.select %30, %28, %32 : vector<8x128xi1>, vector<8x128xf32>
    %c128_i32 = arith.constant 128 : i32
    %34 = arith.muli %arg0, %c128_i32 : i32
    %35 = tpu.iota {dimensions = array<i32: 1>} : vector<8x128xi32>
    %36 = vector.broadcast %34 : i32 to vector<8x128xi32>
    %37 = arith.addi %36, %35 : vector<8x128xi32>
    %38 = vector.broadcast %13 : vector<8x1xi32> to vector<8x128xi32>
    %39 = arith.cmpi eq, %37, %38 : vector<8x128xi32>
    %40 = arith.select %39, %33, %15 : vector<8x128xi1>, vector<8x128xf32>
    %cst_15 = arith.constant 3.000000e+01 : f32
    %41 = vector.broadcast %cst_15 : f32 to vector<8x128xf32>
    %42 = arith.mulf %40, %41 : vector<8x128xf32>
    %c0_16 = arith.constant 0 : index
    %c0_17 = arith.constant 0 : index
    %43 = vector.load %arg5[%c0_16, %c0_17] : memref<8x128xf32, #tpu.memory_space<vmem>>, vector<8x128xf32>
    tpu.vector_store %arg5[%c0_16, %c0_17], %42 {strides = array<i32>} : memref<8x128xf32, #tpu.memory_space<vmem>>, vector<8x128xf32>,
    return
  }
  func.func @transform_0(%arg0: i32, %arg1: i32) -> (i32, i32) {
    %c0_i32 = arith.constant 0 : i32
    %c0_i32_0 = arith.constant 0 : i32
    return %arg1, %c0_i32 : i32, i32
  }
  func.func @transform_1(%arg0: i32, %arg1: i32) -> (i32, i32) {
    %c0_i32 = arith.constant 0 : i32
    %c0_i32_0 = arith.constant 0 : i32
    return %arg0, %c0_i32 : i32, i32
  }
  func.func @transform_2(%arg0: i32, %arg1: i32) -> (i32, i32) {
    %c0_i32 = arith.constant 0 : i32
    %c0_i32_0 = arith.constant 0 : i32
    return %arg1, %c0_i32 : i32, i32
  }
  func.func @transform_3(%arg0: i32, %arg1: i32) -> (i32, i32) {
    %c0_i32 = arith.constant 0 : i32
    return %arg1, %arg0 : i32, i32
  }
}

</mosaic_0001>

<llo_original>
// kernel: tpu_custom_call.1
$region0: #{tpu_custom_call.1}
  #allocation0 [shape = 'u32[]', space=smem, size = 0x4, offset = 0x4, fixed_abs, tag = 'smem constant byte address 0x4 - core index']
  #allocation1 [shape = 'u32[72,128]{1,0:T(1,128)}', space=vmem, size = 0x9000, scoped, tag = 'internal scratch']
  #allocation2 [shape = 'bf16[128,128]{1,0:T(8,128)(2,1)}', space=vmem, size = 0x8000, scoped, tag = 'scratch operand']
  %s0 = inlined_call_operand.vmem [shape: f32[8,128], index: 0, kind: input, shape index: {}]
  %s1 = inlined_call_operand.hbm [shape: f32[128,128], index: 1, kind: input, shape index: {}]
  %s2 = inlined_call_operand.vmem [shape: s32[8,1], index: 2, kind: input, shape index: {}]
  %s3 = inlined_call_operand.hbm [shape: f32[8,128], index: 3, kind: output, shape index: {}]
  %s4 = sld [smem:[#allocation0]]
  $region30: #{tpu_custom_call.1} parent=0
    _
  %s6 = ssub.s32 1, %s4
  %s7 = scalar_select 0, %s6, %s4
  $region1: #{tpu_custom_call.1} parent=0
    #allocation3 [shape = 'u8[65536]{0}', space=vmem, size = 0x10000, scoped, tag = 'input window, operand 1, single buffered']
    #allocation4 [shape = 's32[1]{0}', space=sflag, size = 0x4, scoped, tag = 'scoped memory for tpu_custom_call.1']
    #allocation5 [shape = 's32[1]{0}', space=sflag, size = 0x4, scoped, tag = 'scoped memory for tpu_custom_call.1']
    #allocation6 [shape = 'u8[4096]{0}', space=vmem, size = 0x1000, scoped, tag = 'output window, operand 0, single buffered']
    %8 = vsyncpa [#allocation4], 0
    %9 = vsyncpa [#allocation5], 0
    // Predicated region
    $region2: #{tpu_custom_call.1} parent=1 // pred_check
      _
    $region3: #{tpu_custom_call.1} parent=1 // pred_check_branch
      %11 = sbr.rel (0) target = $region5
    $region4: #{tpu_custom_call.1} parent=1 // pred_region
      _
    $region5: #{tpu_custom_call.1} parent=1 // pred_fallthru
      _
    // Predicated region
    $region6: #{tpu_custom_call.1} parent=1 // pred_check
      _
    $region7: #{tpu_custom_call.1} parent=1 // pred_check_branch
      %13 = sbr.rel (0) target = $region9
    $region8: #{tpu_custom_call.1} parent=1 // pred_region
      %15 = vsyncadd [#allocation4], 0
      %s16 = sshll.u32 %s1, 4
      %s17 = int_to_ptr.hbm [resolvable:$true] %s16
      %s18 = sshll.u32 [#allocation3], 4
      %s19 = int_to_ptr.vmem [resolvable:$true] %s18
      %24 = dma.hbm_to_vmem [thread:$0]  %s17, 2048, %s19, [#allocation4], 128, 128, 8
    $region9: #{tpu_custom_call.1} parent=1 // pred_fallthru
      _
    // Predicated region
    $region10: #{tpu_custom_call.1} parent=1 // pred_check
      _
    $region11: #{tpu_custom_call.1} parent=1 // pred_check_branch
      %26 = sbr.rel (0) target = $region13
    $region12: #{tpu_custom_call.1} parent=1 // pred_region
      _
    $region13: #{tpu_custom_call.1} parent=1 // pred_fallthru
      _
    // Predicated region
    $region14: #{tpu_custom_call.1} parent=1 // pred_check
      _
    $region15: #{tpu_custom_call.1} parent=1 // pred_check_branch
      %28 = sbr.rel (0) target = $region17
    $region16: #{tpu_custom_call.1} parent=1 // pred_region
      %30 = dma.done [#allocation4], 2048
    $region17: #{tpu_custom_call.1} parent=1 // pred_fallthru
      _
    %p31 = scmp.eq.s32.totalorder 0, 0
    // Predicated region
    $region18: #{tpu_custom_call.1} parent=1 // pred_check
      %p32 = pneg %p31
    $region19: #{tpu_custom_call.1} parent=1 // pred_check_branch
      %34 = sbr.rel (%p32) target = $region21
    $region20: #{tpu_custom_call.1} parent=1 // pred_region
      %v35 = vld [vmem:[#allocation3] sm:$0xff]
      %v36 = vld [vmem:[#allocation3 + $0x8] sm:$0xff]
      %v37 = vld [vmem:[#allocation3 + $0x10] sm:$0xff]
      %v38 = vld [vmem:[#allocation3 + $0x18] sm:$0xff]
      %v39 = vld [vmem:[#allocation3 + $0x20] sm:$0xff]
      %v40 = vld [vmem:[#allocation3 + $0x28] sm:$0xff]
      %v41 = vld [vmem:[#allocation3 + $0x30] sm:$0xff]
      %v42 = vld [vmem:[#allocation3 + $0x38] sm:$0xff]
      %v43 = vld [vmem:[#allocation3 + $0x40] sm:$0xff]
      %v44 = vld [vmem:[#allocation3 + $0x48] sm:$0xff]
      %v45 = vld [vmem:[#allocation3 + $0x50] sm:$0xff]
      %v46 = vld [vmem:[#allocation3 + $0x58] sm:$0xff]
      %v47 = vld [vmem:[#allocation3 + $0x60] sm:$0xff]
      %v48 = vld [vmem:[#allocation3 + $0x68] sm:$0xff]
      %v49 = vld [vmem:[#allocation3 + $0x70] sm:$0xff]
      %v50 = vld [vmem:[#allocation3 + $0x78] sm:$0xff]
      %v51 = vmul.f32 %v35, %v35
      %v52 = vmul.f32 %v36, %v36
      %v53 = vmul.f32 %v37, %v37
      %v54 = vmul.f32 %v38, %v38
      %v55 = vmul.f32 %v39, %v39
      %v56 = vmul.f32 %v40, %v40
      %v57 = vmul.f32 %v41, %v41
      %v58 = vmul.f32 %v42, %v42
      %v59 = vmul.f32 %v43, %v43
      %v60 = vmul.f32 %v44, %v44
      %v61 = vmul.f32 %v45, %v45
      %v62 = vmul.f32 %v46, %v46
      %v63 = vmul.f32 %v47, %v47
      %v64 = vmul.f32 %v48, %v48
      %v65 = vmul.f32 %v49, %v49
      %v66 = vmul.f32 %v50, %v50
      %67 = vadd.xlane.f32.xlu0 %v51
      %v68 = vpop.xlane.xlu0 %67
      %69 = vadd.xlane.f32.xlu0 %v52
      %v70 = vpop.xlane.xlu0 %69
      %71 = vadd.xlane.f32.xlu0 %v53
      %v72 = vpop.xlane.xlu0 %71
      %73 = vadd.xlane.f32.xlu0 %v54
      %v74 = vpop.xlane.xlu0 %73
      %75 = vadd.xlane.f32.xlu0 %v55
      %v76 = vpop.xlane.xlu0 %75
      %77 = vadd.xlane.f32.xlu0 %v56
      %v78 = vpop.xlane.xlu0 %77
      %79 = vadd.xlane.f32.xlu0 %v57
      %v80 = vpop.xlane.xlu0 %79
      %81 = vadd.xlane.f32.xlu0 %v58
      %v82 = vpop.xlane.xlu0 %81
      %83 = vadd.xlane.f32.xlu0 %v59
      %v84 = vpop.xlane.xlu0 %83
      %85 = vadd.xlane.f32.xlu0 %v60
      %v86 = vpop.xlane.xlu0 %85
      %87 = vadd.xlane.f32.xlu0 %v61
      %v88 = vpop.xlane.xlu0 %87
      %89 = vadd.xlane.f32.xlu0 %v62
      %v90 = vpop.xlane.xlu0 %89
      %91 = vadd.xlane.f32.xlu0 %v63
      %v92 = vpop.xlane.xlu0 %91
      %93 = vadd.xlane.f32.xlu0 %v64
      %v94 = vpop.xlane.xlu0 %93
      %95 = vadd.xlane.f32.xlu0 %v65
      %v96 = vpop.xlane.xlu0 %95
      %97 = vadd.xlane.f32.xlu0 %v66
      %v98 = vpop.xlane.xlu0 %97
      %v99 = vmax.f32 %v68, 1e-24
      %v100 = vmax.f32 %v70, 1e-24
      %v101 = vmax.f32 %v72, 1e-24
      %v102 = vmax.f32 %v74, 1e-24
      %v103 = vmax.f32 %v76, 1e-24
      %v104 = vmax.f32 %v78, 1e-24
      %v105 = vmax.f32 %v80, 1e-24
      %v106 = vmax.f32 %v82, 1e-24
      %v107 = vmax.f32 %v84, 1e-24
      %v108 = vmax.f32 %v86, 1e-24
      %v109 = vmax.f32 %v88, 1e-24
      %v110 = vmax.f32 %v90, 1e-24
      %v111 = vmax.f32 %v92, 1e-24
      %v112 = vmax.f32 %v94, 1e-24
      %v113 = vmax.f32 %v96, 1e-24
      %v114 = vmax.f32 %v98, 1e-24
      %v115 = vrsqrt.pop %v99
      %v116 = vmul.f32 %v115, %v99
      %v117 = vmul.f32 %v116, %v115
      %v118 = vmul.f32 0.5, %v117
      %v119 = vsub.f32 1.5, %v118
      %v120 = vmul.f32 %v115, %v119
      %vm121 = vweird.f32 %v99
      %vm122 = vweird.f32 %v115
      %vm123 = vmor %vm121, %vm122
      %v124 = vsel %vm123, %v115, %v120
      %v125 = vrsqrt.pop %v100
      %v126 = vmul.f32 %v125, %v100
      %v127 = vmul.f32 %v126, %v125
      %v128 = vmul.f32 0.5, %v127
      %v129 = vsub.f32 1.5, %v128
      %v130 = vmul.f32 %v125, %v129
      %vm131 = vweird.f32 %v100
      %vm132 = vweird.f32 %v125
      %vm133 = vmor %vm131, %vm132
      %v134 = vsel %vm133, %v125, %v130
      %v135 = vrsqrt.pop %v101
      %v136 = vmul.f32 %v135, %v101
      %v137 = vmul.f32 %v136, %v135
      %v138 = vmul.f32 0.5, %v137
      %v139 = vsub.f32 1.5, %v138
      %v140 = vmul.f32 %v135, %v139
      %vm141 = vweird.f32 %v101
      %vm142 = vweird.f32 %v135
      %vm143 = vmor %vm141, %vm142
      %v144 = vsel %vm143, %v135, %v140
      %v145 = vrsqrt.pop %v102
      %v146 = vmul.f32 %v145, %v102
      %v147 = vmul.f32 %v146, %v145
      %v148 = vmul.f32 0.5, %v147
      %v149 = vsub.f32 1.5, %v148
      %v150 = vmul.f32 %v145, %v149
      %vm151 = vweird.f32 %v102
      %vm152 = vweird.f32 %v145
      %vm153 = vmor %vm151, %vm152
      %v154 = vsel %vm153, %v145, %v150
      %v155 = vrsqrt.pop %v103
      %v156 = vmul.f32 %v155, %v103
      %v157 = vmul.f32 %v156, %v155
      %v158 = vmul.f32 0.5, %v157
      %v159 = vsub.f32 1.5, %v158
      %v160 = vmul.f32 %v155, %v159
      %vm161 = vweird.f32 %v103
      %vm162 = vweird.f32 %v155
      %vm163 = vmor %vm161, %vm162
      %v164 = vsel %vm163, %v155, %v160
      %v165 = vrsqrt.pop %v104
      %v166 = vmul.f32 %v165, %v104
      %v167 = vmul.f32 %v166, %v165
      %v168 = vmul.f32 0.5, %v167
      %v169 = vsub.f32 1.5, %v168
      %v170 = vmul.f32 %v165, %v169
      %vm171 = vweird.f32 %v104
      %vm172 = vweird.f32 %v165
      %vm173 = vmor %vm171, %vm172
      %v174 = vsel %vm173, %v165, %v170
      %v175 = vrsqrt.pop %v105
      %v176 = vmul.f32 %v175, %v105
      %v177 = vmul.f32 %v176, %v175
      %v178 = vmul.f32 0.5, %v177
      %v179 = vsub.f32 1.5, %v178
      %v180 = vmul.f32 %v175, %v179
      %vm181 = vweird.f32 %v105
      %vm182 = vweird.f32 %v175
      %vm183 = vmor %vm181, %vm182
      %v184 = vsel %vm183, %v175, %v180
      %v185 = vrsqrt.pop %v106
      %v186 = vmul.f32 %v185, %v106
      %v187 = vmul.f32 %v186, %v185
      %v188 = vmul.f32 0.5, %v187
      %v189 = vsub.f32 1.5, %v188
      %v190 = vmul.f32 %v185, %v189
      %vm191 = vweird.f32 %v106
      %vm192 = vweird.f32 %v185
      %vm193 = vmor %vm191, %vm192
      %v194 = vsel %vm193, %v185, %v190
      %v195 = vrsqrt.pop %v107
      %v196 = vmul.f32 %v195, %v107
      %v197 = vmul.f32 %v196, %v195
      %v198 = vmul.f32 0.5, %v197
      %v199 = vsub.f32 1.5, %v198
      %v200 = vmul.f32 %v195, %v199
      %vm201 = vweird.f32 %v107
      %vm202 = vweird.f32 %v195
      %vm203 = vmor %vm201, %vm202
      %v204 = vsel %vm203, %v195, %v200
      %v205 = vrsqrt.pop %v108
      %v206 = vmul.f32 %v205, %v108
      %v207 = vmul.f32 %v206, %v205
      %v208 = vmul.f32 0.5, %v207
      %v209 = vsub.f32 1.5, %v208
      %v210 = vmul.f32 %v205, %v209
      %vm211 = vweird.f32 %v108
      %vm212 = vweird.f32 %v205
      %vm213 = vmor %vm211, %vm212
      %v214 = vsel %vm213, %v205, %v210
      %v215 = vrsqrt.pop %v109
      %v216 = vmul.f32 %v215, %v109
      %v217 = vmul.f32 %v216, %v215
      %v218 = vmul.f32 0.5, %v217
      %v219 = vsub.f32 1.5, %v218
      %v220 = vmul.f32 %v215, %v219
      %vm221 = vweird.f32 %v109
      %vm222 = vweird.f32 %v215
      %vm223 = vmor %vm221, %vm222
      %v224 = vsel %vm223, %v215, %v220
      %v225 = vrsqrt.pop %v110
      %v226 = vmul.f32 %v225, %v110
      %v227 = vmul.f32 %v226, %v225
      %v228 = vmul.f32 0.5, %v227
      %v229 = vsub.f32 1.5, %v228
      %v230 = vmul.f32 %v225, %v229
      %vm231 = vweird.f32 %v110
      %vm232 = vweird.f32 %v225
      %vm233 = vmor %vm231, %vm232
      %v234 = vsel %vm233, %v225, %v230
      %v235 = vrsqrt.pop %v111
      %v236 = vmul.f32 %v235, %v111
      %v237 = vmul.f32 %v236, %v235
      %v238 = vmul.f32 0.5, %v237
      %v239 = vsub.f32 1.5, %v238
      %v240 = vmul.f32 %v235, %v239
      %vm241 = vweird.f32 %v111
      %vm242 = vweird.f32 %v235
      %vm243 = vmor %vm241, %vm242
      %v244 = vsel %vm243, %v235, %v240
      %v245 = vrsqrt.pop %v112
      %v246 = vmul.f32 %v245, %v112
      %v247 = vmul.f32 %v246, %v245
      %v248 = vmul.f32 0.5, %v247
      %v249 = vsub.f32 1.5, %v248
      %v250 = vmul.f32 %v245, %v249
      %vm251 = vweird.f32 %v112
      %vm252 = vweird.f32 %v245
      %vm253 = vmor %vm251, %vm252
      %v254 = vsel %vm253, %v245, %v250
      %v255 = vrsqrt.pop %v113
      %v256 = vmul.f32 %v255, %v113
      %v257 = vmul.f32 %v256, %v255
      %v258 = vmul.f32 0.5, %v257
      %v259 = vsub.f32 1.5, %v258
      %v260 = vmul.f32 %v255, %v259
      %vm261 = vweird.f32 %v113
      %vm262 = vweird.f32 %v255
      %vm263 = vmor %vm261, %vm262
      %v264 = vsel %vm263, %v255, %v260
      %v265 = vrsqrt.pop %v114
      %v266 = vmul.f32 %v265, %v114
      %v267 = vmul.f32 %v266, %v265
      %v268 = vmul.f32 0.5, %v267
      %v269 = vsub.f32 1.5, %v268
      %v270 = vmul.f32 %v265, %v269
      %vm271 = vweird.f32 %v114
      %vm272 = vweird.f32 %v265
      %vm273 = vmor %vm271, %vm272
      %v274 = vsel %vm273, %v265, %v270
      %v275 = vmul.f32 %v35, %v124
      %v276 = vmul.f32 %v36, %v134
      %v277 = vmul.f32 %v37, %v144
      %v278 = vmul.f32 %v38, %v154
      %v279 = vmul.f32 %v39, %v164
      %v280 = vmul.f32 %v40, %v174
      %v281 = vmul.f32 %v41, %v184
      %v282 = vmul.f32 %v42, %v194
      %v283 = vmul.f32 %v43, %v204
      %v284 = vmul.f32 %v44, %v214
      %v285 = vmul.f32 %v45, %v224
      %v286 = vmul.f32 %v46, %v234
      %v287 = vmul.f32 %v47, %v244
      %v288 = vmul.f32 %v48, %v254
      %v289 = vmul.f32 %v49, %v264
      %v290 = vmul.f32 %v50, %v274
      %v291 = vpack.c.bf16 %v275, %v275
      %v292 = vpack.c.bf16 %v276, %v276
      %v293 = vpack.c.bf16 %v277, %v277
      %v294 = vpack.c.bf16 %v278, %v278
      %v295 = vpack.c.bf16 %v279, %v279
      %v296 = vpack.c.bf16 %v280, %v280
      %v297 = vpack.c.bf16 %v281, %v281
      %v298 = vpack.c.bf16 %v282, %v282
      %v299 = vpack.c.bf16 %v283, %v283
      %v300 = vpack.c.bf16 %v284, %v284
      %v301 = vpack.c.bf16 %v285, %v285
      %v302 = vpack.c.bf16 %v286, %v286
      %v303 = vpack.c.bf16 %v287, %v287
      %v304 = vpack.c.bf16 %v288, %v288
      %v305 = vpack.c.bf16 %v289, %v289
      %v306 = vpack.c.bf16 %v290, %v290
      %307 = vst [vmem:[#allocation2] sm:$0xf] %v291
      %308 = vst [vmem:[#allocation2 + $0x4] sm:$0xf] %v292
      %309 = vst [vmem:[#allocation2 + $0x8] sm:$0xf] %v293
      %310 = vst [vmem:[#allocation2 + $0xc] sm:$0xf] %v294
      %311 = vst [vmem:[#allocation2 + $0x10] sm:$0xf] %v295
      %312 = vst [vmem:[#allocation2 + $0x14] sm:$0xf] %v296
      %313 = vst [vmem:[#allocation2 + $0x18] sm:$0xf] %v297
      %314 = vst [vmem:[#allocation2 + $0x1c] sm:$0xf] %v298
      %315 = vst [vmem:[#allocation2 + $0x20] sm:$0xf] %v299
      %316 = vst [vmem:[#allocation2 + $0x24] sm:$0xf] %v300
      %317 = vst [vmem:[#allocation2 + $0x28] sm:$0xf] %v301
      %318 = vst [vmem:[#allocation2 + $0x2c] sm:$0xf] %v302
      %319 = vst [vmem:[#allocation2 + $0x30] sm:$0xf] %v303
      %320 = vst [vmem:[#allocation2 + $0x34] sm:$0xf] %v304
      %321 = vst [vmem:[#allocation2 + $0x38] sm:$0xf] %v305
      %322 = vst [vmem:[#allocation2 + $0x3c] sm:$0xf] %v306
    $region21: #{tpu_custom_call.1} parent=1 // pred_fallthru
      _
    %v323 = vld [vmem:[%s0] sm:$0xff]
    %v324 = vmul.f32 %v323, %v323
    %325 = vadd.xlane.f32.xlu0 %v324
    %v326 = vpop.xlane.xlu0 %325
    %v327 = vmax.f32 %v326, 1e-24
    %v328 = vrsqrt.pop %v327
    %v329 = vmul.f32 %v328, %v327
    %v330 = vmul.f32 %v329, %v328
    %v331 = vmul.f32 0.5, %v330
    %v332 = vsub.f32 1.5, %v331
    %v333 = vmul.f32 %v328, %v332
    %vm334 = vweird.f32 %v327
    %vm335 = vweird.f32 %v328
    %vm336 = vmor %vm334, %vm335
    %v337 = vsel %vm336, %v328, %v333
    %v338 = vmul.f32 %v323, %v337
    %v339 = vpack.c.bf16 %v338, %v338
    %v340 = vld [vmem:[%s2] sm:$0xff]
    %v341 = vld [vmem:[#allocation2] sm:$0xf]
    %v342 = vld [vmem:[#allocation2 + $0x4] sm:$0xf]
    %v343 = vld [vmem:[#allocation2 + $0x8] sm:$0xf]
    %v344 = vld [vmem:[#allocation2 + $0xc] sm:$0xf]
    %v345 = vld [vmem:[#allocation2 + $0x10] sm:$0xf]
    %v346 = vld [vmem:[#allocation2 + $0x14] sm:$0xf]
    %v347 = vld [vmem:[#allocation2 + $0x18] sm:$0xf]
    %v348 = vld [vmem:[#allocation2 + $0x1c] sm:$0xf]
    %v349 = vld [vmem:[#allocation2 + $0x20] sm:$0xf]
    %v350 = vld [vmem:[#allocation2 + $0x24] sm:$0xf]
    %v351 = vld [vmem:[#allocation2 + $0x28] sm:$0xf]
    %v352 = vld [vmem:[#allocation2 + $0x2c] sm:$0xf]
    %v353 = vld [vmem:[#allocation2 + $0x30] sm:$0xf]
    %v354 = vld [vmem:[#allocation2 + $0x34] sm:$0xf]
    %v355 = vld [vmem:[#allocation2 + $0x38] sm:$0xf]
    %v356 = vld [vmem:[#allocation2 + $0x3c] sm:$0xf]
    %v373 = vunpack.c.l.b16 %v341
    %v374 = vunpack.c.l.b16 %v342
    %v375 = vunpack.c.l.b16 %v343
    %v376 = vunpack.c.l.b16 %v344
    %v377 = vunpack.c.l.b16 %v345
    %v378 = vunpack.c.l.b16 %v346
    %v379 = vunpack.c.l.b16 %v347
    %v380 = vunpack.c.l.b16 %v348
    %v381 = vunpack.c.l.b16 %v349
    %v382 = vunpack.c.l.b16 %v350
    %v383 = vunpack.c.l.b16 %v351
    %v384 = vunpack.c.l.b16 %v352
    %v385 = vunpack.c.l.b16 %v353
    %v386 = vunpack.c.l.b16 %v354
    %v387 = vunpack.c.l.b16 %v355
    %v388 = vunpack.c.l.b16 %v356
    %v389 = vpack.c.b16 %v374, %v373
    %v390 = vpack.c.b16 %v376, %v375
    %v391 = vpack.c.b16 %v378, %v377
    %v392 = vpack.c.b16 %v380, %v379
    %v393 = vpack.c.b16 %v382, %v381
    %v394 = vpack.c.b16 %v384, %v383
    %v395 = vpack.c.b16 %v386, %v385
    %v396 = vpack.c.b16 %v388, %v387
    %405 = vmatpush.bf16.xpose.msra.mxu0 %v396
    %406 = vmatpush.bf16.xpose.msra.mxu0 %v395
    %407 = vmatpush.bf16.xpose.msra.mxu0 %v394
    %408 = vmatpush.bf16.xpose.msra.mxu0 %v393
    %409 = vmatpush.bf16.xpose.msra.mxu0 %v392
    %410 = vmatpush.bf16.xpose.msra.mxu0 %v391
    %411 = vmatpush.bf16.xpose.msra.mxu0 %v390
    %412 = vmatpush.bf16.xpose.msra.mxu0 %v389
    %413 = vmatmul.bf16.gmra.mxu0 %v339
    %v414 = vpop.f32.mrf.mxu0
    %v415 = vadd.f32 0.0, %v414
    %v416 = vpop.f32.mrf.mxu0
    %417 = vdwg.mxu0
    %v418 = vmul.f32 %v415, %v415
    %v419 = vsub.f32 1.0, %v418
    %v420 = vmax.f32 %v419, 0.0
    %v421 = vmin.f32 %v420, 1.0
    %v422 = vrsqrt.pop %v421
    %v423 = vmul.f32 %v422, %v421
    %v424 = vmul.f32 %v423, %v422
    %v425 = vmul.f32 0.5, %v424
    %v426 = vsub.f32 1.5, %v425
    %v427 = vmul.f32 %v422, %v426
    %v428 = vmul.f32 %v421, %v427
    %vm429 = vcmp.eq.f32.partialorder %v421, inf
    %v430 = vsel %vm429, %v421, %v428
    %vm431 = vcmp.eq.f32.partialorder %v421, 0.0
    %v432 = vand.u32 %v421, 2147483648
    %v433 = vsel %vm431, %v432, %v430
    %v434 = vmul.f32 %v415, 0.87758255
    %v435 = vmul.f32 %v433, 0.47942555
    %v436 = vsub.f32 %v434, %v435
    %vm437 = vcmp.gt.f32.partialorder %v415, -0.87758255
    %v438 = vsub.f32 %v415, 0.23971277
    %v439 = vsel %vm437, %v436, %v438
    %s440 = smul.u32 0, 128
    %v441 = vlaneseq
    %v442 = vand.u32 %v441, 127
    %v443 = vstv %s440
    %v444 = vadd.s32 %v443, %v442
    %445 = vset.pattern.permute.xlu0 0
    %446 = vperm.xlu0 %445, %v340
    %v447 = vpop.permute.xlu0 %446
    %vm448 = vcmp.eq.s32.totalorder %v444, %v447
    %v449 = vsel %vm448, %v439, %v415
    %v450 = vmul.f32 %v449, 30.0
    %451 = vst [vmem:[#allocation6] sm:$0xff] %v450
    // Predicated region
    $region22: #{tpu_custom_call.1} parent=1 // pred_check
      _
    $region23: #{tpu_custom_call.1} parent=1 // pred_check_branch
      %453 = sbr.rel (0) target = $region25
    $region24: #{tpu_custom_call.1} parent=1 // pred_region
      %455 = vsyncadd [#allocation5], 0
      %s457 = sshll.u32 [#allocation6], 4
      %s458 = int_to_ptr.vmem [resolvable:$true] %s457
      %s459 = sshll.u32 %s3, 4
      %s460 = int_to_ptr.hbm [resolvable:$true] %s459
      %462 = dma.vmem_to_hbm [thread:$0]  %s458, 128, %s460, [#allocation5]
    $region25: #{tpu_custom_call.1} parent=1 // pred_fallthru
      _
    // Predicated region
    $region26: #{tpu_custom_call.1} parent=1 // pred_check
      _
    $region27: #{tpu_custom_call.1} parent=1 // pred_check_branch
      %464 = sbr.rel (0) target = $region29
    $region28: #{tpu_custom_call.1} parent=1 // pred_region
      %466 = dma.done [#allocation5], 128
    $region29: #{tpu_custom_call.1} parent=1 // pred_fallthru
      _
    %467 = vsyncpa [#allocation4], 1
    %468 = vsyncpa [#allocation5], 1

</llo_original>
